<compile_context>
chip_gen: v6e
topology: v6e:2x2x1
jax: 0.10.0
libtpu: 0.0.40
codegen_flags: <defaults>
</compile_context>

<pallas_src>
import jax
import jax.numpy as jnp
from jax.experimental import pallas as pl
from jax.experimental.pallas import tpu as pltpu

S, B, C = 7, 2, 20
F = C + B * 5            # 30 features per cell
LAMBDA_NOOBJ = 0.5
LAMBDA_COORD = 5.0
NCORES = 2               # leading "parallel" grid axis (uses both TCs on v7x)


def _round_up(x, m):
    return ((x + m - 1) // m) * m


def _iou_rows(bp, bt):
    """Midpoint-format IoU. bp, bt: (4, T) rows [x, y, w, h] -> (1, T)."""
    p_x1 = bp[0:1, :] - bp[2:3, :] * 0.5
    p_y1 = bp[1:2, :] - bp[3:4, :] * 0.5
    p_x2 = bp[0:1, :] + bp[2:3, :] * 0.5
    p_y2 = bp[1:2, :] + bp[3:4, :] * 0.5
    t_x1 = bt[0:1, :] - bt[2:3, :] * 0.5
    t_y1 = bt[1:2, :] - bt[3:4, :] * 0.5
    t_x2 = bt[0:1, :] + bt[2:3, :] * 0.5
    t_y2 = bt[1:2, :] + bt[3:4, :] * 0.5

    x1 = jnp.maximum(p_x1, t_x1)
    y1 = jnp.maximum(p_y1, t_y1)
    x2 = jnp.minimum(p_x2, t_x2)
    y2 = jnp.minimum(p_y2, t_y2)

    inter = jnp.maximum(x2 - x1, 0.0) * jnp.maximum(y2 - y1, 0.0)
    area_p = jnp.abs((p_x2 - p_x1) * (p_y2 - p_y1))
    area_t = jnp.abs((t_x2 - t_x1) * (t_y2 - t_y1))
    # EUP approx reciprocal: only feeds a ">" comparison downstream.
    return inter * pl.reciprocal(area_p + area_t - inter + 1e-6, approx=True)


def yolo_loss_kernel(pred_ref, tgt_ref, out_ref, acc_ref):
    i = pl.program_id(1)

    @pl.when(i == 0)
    def _init():
        acc_ref[...] = jnp.zeros_like(acc_ref)

    pred = pred_ref[...]   # (30, TILE) f32, feature-major
    tgt = tgt_ref[...]     # (30, TILE) f32

    # ---- IoU of both predicted boxes vs. the single target box ----
    tbox = tgt[21:25, :]
    iou_b1 = _iou_rows(pred[21:25, :], tbox)
    iou_b2 = _iou_rows(pred[26:30, :], tbox)
    # torch.max over stacked [iou_b1, iou_b2] returns index 0 on ties.
    best = (iou_b2 > iou_b1).astype(jnp.float32)   # (1, TILE)

    exists = tgt[20:21, :]                          # (1, TILE)
    noobj = 1.0 - exists

    # ---- box coordinate loss (spec uses sqrt(abs(.) + 1e-6) on both sides) ----
    box_pred = exists * (best * pred[26:30, :] + (1.0 - best) * pred[21:25, :])
    box_tgt = exists * tgt[21:25, :]
    d_xy = box_pred[0:2, :] - box_tgt[0:2, :]
    d_wh = (jnp.sqrt(jnp.abs(box_pred[2:4, :]) + 1e-6)
            - jnp.sqrt(jnp.abs(box_tgt[2:4, :]) + 1e-6))
    coord_se = jnp.sum(d_xy * d_xy + d_wh * d_wh, axis=0, keepdims=True)

    # ---- object loss (exists*a - exists*b == exists*(a-b), exact factoring) ----
    pred_conf = best * pred[25:26, :] + (1.0 - best) * pred[20:21, :]
    d_obj = exists * (pred_conf - tgt[20:21, :])
    obj_se = d_obj * d_obj

    # ---- no-object loss (keep the noobj*target term: exact even if the
    #      objectness channel is not strictly 0/1) ----
    d_no1 = noobj * (pred[20:21, :] - tgt[20:21, :])
    d_no2 = noobj * (pred[25:26, :] - tgt[20:21, :])
    noobj_se = d_no1 * d_no1 + d_no2 * d_no2

    # ---- class loss ----
    d_cls = exists * (pred[0:C, :] - tgt[0:C, :])
    cls_se = jnp.sum(d_cls * d_cls, axis=0, keepdims=True)

    acc_ref[...] += (LAMBDA_COORD * coord_se + obj_se
                     + LAMBDA_NOOBJ * noobj_se + cls_se)

    @pl.when(i == pl.num_programs(1) - 1)
    def _finalize():
        out_ref[0, 0, 0] = jnp.sum(acc_ref[...])


def yolo_loss(predictions, target, *, tile=512):
    # glue: flatten to per-cell rows, pad the cell axis (zeros add 0 loss),
    # and transpose to feature-major (30, Npad) so the kernel is lane-dense.
    pred2d = predictions.reshape(-1, F)
    tgt2d = target.reshape(-1, F)
    if pred2d.dtype != jnp.float32:
        pred2d = pred2d.astype(jnp.float32)
    if tgt2d.dtype != jnp.float32:
        tgt2d = tgt2d.astype(jnp.float32)

    n = pred2d.shape[0]
    tile = max(128, min(tile, _round_up(max(n, 1), 128)))   # lane-dim multiple of 128
    num_tiles = _round_up(pl.cdiv(n, tile), NCORES)
    tiles_per_core = num_tiles // NCORES
    n_pad = num_tiles * tile

    if n_pad != n:
        pred2d = jnp.pad(pred2d, ((0, n_pad - n), (0, 0)))
        tgt2d = jnp.pad(tgt2d, ((0, n_pad - n), (0, 0)))

    pred_t = pred2d.T    # (30, n_pad)
    tgt_t = tgt2d.T      # (30, n_pad)

    idx = lambda c, i: (0, c * tiles_per_core + i)
    partial = pl.pallas_call(
        yolo_loss_kernel,
        out_shape=jax.ShapeDtypeStruct((NCORES, 1, 1), jnp.float32),
        grid_spec=pltpu.PrefetchScalarGridSpec(
            num_scalar_prefetch=0,
            grid=(NCORES, tiles_per_core),
            in_specs=[pl.BlockSpec((F, tile), idx),
                      pl.BlockSpec((F, tile), idx)],
            out_specs=pl.BlockSpec((1, 1, 1), lambda c, i: (c, 0, 0),
                                   memory_space=pltpu.MemorySpace.SMEM),
            scratch_shapes=[pltpu.VMEM((1, tile), jnp.float32)],
        ),
        compiler_params=pltpu.CompilerParams(
            dimension_semantics=("parallel", "arbitrary")),
    )(pred_t, tgt_t)
    return jnp.sum(partial)


if __name__ == "__main__":
    key = jax.random.PRNGKey(0)
    k1, k2, k3 = jax.random.split(key, 3)
    N = 2

    # predictions: (N, S*S*(C+5B)) = (2, 1470), target: (N, S, S, 30)
    predictions = jax.random.normal(k1, (N, S * S * F), dtype=jnp.float32)
    target = jax.random.normal(k2, (N, S, S, F), dtype=jnp.float32)
    # objectness indicator in channel 20 is 0/1 like a real YOLO target
    exists = (jax.random.uniform(k3, (N, S, S)) > 0.7).astype(jnp.float32)
    target = target.at[..., 20].set(exists)

    loss = yolo_loss(predictions, target)
    jax.block_until_ready(loss)
    print("KERNEL_OK")
</pallas_src>

<mosaic_0001>
module attributes {stable_mosaic.version = 11 : i64} {
  func.func @yolo_loss_kernel(%arg0: i32, %arg1: i32, %arg2: memref<30x128xf32, #tpu.memory_space<vmem>>, %arg3: memref<30x128xf32, #tpu.memory_space<vmem>>, %arg4: memref<1x1x1xf32, #tpu.memory_space<smem>>, %arg5: memref<1x128xf32, #tpu.memory_space<vmem>>) attributes {dimension_semantics = [#tpu.dimension_semantics<parallel>, #tpu.dimension_semantics<arbitrary>], iteration_bounds = array<i64: 2, 1>, scalar_prefetch = 0 : i64, scratch_operands = 1 : i64, tpu.core_type = #tpu.core_type<tc>, window_params = [{transform_indices = @transform_0, window_bounds = array<i64: 30, 128>}, {transform_indices = @transform_1, window_bounds = array<i64: 30, 128>}, {transform_indices = @transform_2, window_bounds = array<i64: 1, 1, 1>}]} {
    %c0_i32 = arith.constant 0 : i32
    %0 = arith.cmpi eq, %arg1, %c0_i32 : i32
    %1 = arith.extui %0 : i1 to i32
    %c0_i32_0 = arith.constant 0 : i32
    %2 = arith.cmpi ne, %1, %c0_i32_0 : i32
    scf.if %2 {
      %cst_40 = arith.constant 0.000000e+00 : f32
      %220 = vector.broadcast %cst_40 : f32 to vector<1x128xf32>
      %c0_41 = arith.constant 0 : index
      %c0_42 = arith.constant 0 : index
      %221 = vector.load %arg5[%c0_41, %c0_42] : memref<1x128xf32, #tpu.memory_space<vmem>>, vector<1x128xf32>
      tpu.vector_store %arg5[%c0_41, %c0_42], %220 {strides = array<i32>} : memref<1x128xf32, #tpu.memory_space<vmem>>, vector<1x128xf32>,
    } else {
    }
    %c0 = arith.constant 0 : index
    %c0_1 = arith.constant 0 : index
    %3 = vector.load %arg2[%c0, %c0_1] : memref<30x128xf32, #tpu.memory_space<vmem>>, vector<30x128xf32>
    %c0_2 = arith.constant 0 : index
    %c0_3 = arith.constant 0 : index
    %4 = vector.load %arg3[%c0_2, %c0_3] : memref<30x128xf32, #tpu.memory_space<vmem>>, vector<30x128xf32>
    %5 = vector.extract_strided_slice %4 {offsets = [21, 0], sizes = [4, 128], strides = [1, 1]} : vector<30x128xf32> to vector<4x128xf32>
    %6 = vector.extract_strided_slice %3 {offsets = [21, 0], sizes = [4, 128], strides = [1, 1]} : vector<30x128xf32> to vector<4x128xf32>
    %7 = vector.extract_strided_slice %6 {offsets = [0, 0], sizes = [1, 128], strides = [1, 1]} : vector<4x128xf32> to vector<1x128xf32>
    %8 = vector.extract_strided_slice %6 {offsets = [2, 0], sizes = [1, 128], strides = [1, 1]} : vector<4x128xf32> to vector<1x128xf32>
    %cst = arith.constant 5.000000e-01 : f32
    %9 = vector.broadcast %cst : f32 to vector<1x128xf32>
    %10 = arith.mulf %8, %9 : vector<1x128xf32>
    %11 = arith.subf %7, %10 : vector<1x128xf32>
    %12 = vector.extract_strided_slice %6 {offsets = [1, 0], sizes = [1, 128], strides = [1, 1]} : vector<4x128xf32> to vector<1x128xf32>
    %13 = vector.extract_strided_slice %6 {offsets = [3, 0], sizes = [1, 128], strides = [1, 1]} : vector<4x128xf32> to vector<1x128xf32>
    %cst_4 = arith.constant 5.000000e-01 : f32
    %14 = vector.broadcast %cst_4 : f32 to vector<1x128xf32>
    %15 = arith.mulf %13, %14 : vector<1x128xf32>
    %16 = arith.subf %12, %15 : vector<1x128xf32>
    %17 = vector.extract_strided_slice %6 {offsets = [0, 0], sizes = [1, 128], strides = [1, 1]} : vector<4x128xf32> to vector<1x128xf32>
    %18 = vector.extract_strided_slice %6 {offsets = [2, 0], sizes = [1, 128], strides = [1, 1]} : vector<4x128xf32> to vector<1x128xf32>
    %cst_5 = arith.constant 5.000000e-01 : f32
    %19 = vector.broadcast %cst_5 : f32 to vector<1x128xf32>
    %20 = arith.mulf %18, %19 : vector<1x128xf32>
    %21 = arith.addf %17, %20 : vector<1x128xf32>
    %22 = vector.extract_strided_slice %6 {offsets = [1, 0], sizes = [1, 128], strides = [1, 1]} : vector<4x128xf32> to vector<1x128xf32>
    %23 = vector.extract_strided_slice %6 {offsets = [3, 0], sizes = [1, 128], strides = [1, 1]} : vector<4x128xf32> to vector<1x128xf32>
    %cst_6 = arith.constant 5.000000e-01 : f32
    %24 = vector.broadcast %cst_6 : f32 to vector<1x128xf32>
    %25 = arith.mulf %23, %24 : vector<1x128xf32>
    %26 = arith.addf %22, %25 : vector<1x128xf32>
    %27 = vector.extract_strided_slice %5 {offsets = [0, 0], sizes = [1, 128], strides = [1, 1]} : vector<4x128xf32> to vector<1x128xf32>
    %28 = vector.extract_strided_slice %5 {offsets = [2, 0], sizes = [1, 128], strides = [1, 1]} : vector<4x128xf32> to vector<1x128xf32>
    %cst_7 = arith.constant 5.000000e-01 : f32
    %29 = vector.broadcast %cst_7 : f32 to vector<1x128xf32>
    %30 = arith.mulf %28, %29 : vector<1x128xf32>
    %31 = arith.subf %27, %30 : vector<1x128xf32>
    %32 = vector.extract_strided_slice %5 {offsets = [1, 0], sizes = [1, 128], strides = [1, 1]} : vector<4x128xf32> to vector<1x128xf32>
    %33 = vector.extract_strided_slice %5 {offsets = [3, 0], sizes = [1, 128], strides = [1, 1]} : vector<4x128xf32> to vector<1x128xf32>
    %cst_8 = arith.constant 5.000000e-01 : f32
    %34 = vector.broadcast %cst_8 : f32 to vector<1x128xf32>
    %35 = arith.mulf %33, %34 : vector<1x128xf32>
    %36 = arith.subf %32, %35 : vector<1x128xf32>
    %37 = vector.extract_strided_slice %5 {offsets = [0, 0], sizes = [1, 128], strides = [1, 1]} : vector<4x128xf32> to vector<1x128xf32>
    %38 = vector.extract_strided_slice %5 {offsets = [2, 0], sizes = [1, 128], strides = [1, 1]} : vector<4x128xf32> to vector<1x128xf32>
    %cst_9 = arith.constant 5.000000e-01 : f32
    %39 = vector.broadcast %cst_9 : f32 to vector<1x128xf32>
    %40 = arith.mulf %38, %39 : vector<1x128xf32>
    %41 = arith.addf %37, %40 : vector<1x128xf32>
    %42 = vector.extract_strided_slice %5 {offsets = [1, 0], sizes = [1, 128], strides = [1, 1]} : vector<4x128xf32> to vector<1x128xf32>
    %43 = vector.extract_strided_slice %5 {offsets = [3, 0], sizes = [1, 128], strides = [1, 1]} : vector<4x128xf32> to vector<1x128xf32>
    %cst_10 = arith.constant 5.000000e-01 : f32
    %44 = vector.broadcast %cst_10 : f32 to vector<1x128xf32>
    %45 = arith.mulf %43, %44 : vector<1x128xf32>
    %46 = arith.addf %42, %45 : vector<1x128xf32>
    %47 = arith.maximumf %11, %31 : vector<1x128xf32>
    %48 = arith.maximumf %16, %36 : vector<1x128xf32>
    %49 = arith.minimumf %21, %41 : vector<1x128xf32>
    %50 = arith.minimumf %26, %46 : vector<1x128xf32>
    %51 = arith.subf %49, %47 : vector<1x128xf32>
    %cst_11 = arith.constant 0.000000e+00 : f32
    %52 = vector.broadcast %cst_11 : f32 to vector<1x128xf32>
    %53 = arith.maximumf %51, %52 : vector<1x128xf32>
    %54 = arith.subf %50, %48 : vector<1x128xf32>
    %cst_12 = arith.constant 0.000000e+00 : f32
    %55 = vector.broadcast %cst_12 : f32 to vector<1x128xf32>
    %56 = arith.maximumf %54, %55 : vector<1x128xf32>
    %57 = arith.mulf %53, %56 : vector<1x128xf32>
    %58 = arith.subf %21, %11 : vector<1x128xf32>
    %59 = arith.subf %26, %16 : vector<1x128xf32>
    %60 = arith.mulf %58, %59 : vector<1x128xf32>
    %61 = math.absf %60 : vector<1x128xf32>
    %62 = arith.subf %41, %31 : vector<1x128xf32>
    %63 = arith.subf %46, %36 : vector<1x128xf32>
    %64 = arith.mulf %62, %63 : vector<1x128xf32>
    %65 = math.absf %64 : vector<1x128xf32>
    %66 = arith.addf %61, %65 : vector<1x128xf32>
    %67 = arith.subf %66, %57 : vector<1x128xf32>
    %cst_13 = arith.constant 9.99999997E-7 : f32
    %68 = vector.broadcast %cst_13 : f32 to vector<1x128xf32>
    %69 = arith.addf %67, %68 : vector<1x128xf32>
    %70 = tpu.reciprocal %69 {approx = true} : vector<1x128xf32> -> vector<1x128xf32>
    %71 = arith.mulf %57, %70 : vector<1x128xf32>
    %72 = vector.extract_strided_slice %3 {offsets = [26, 0], sizes = [4, 128], strides = [1, 1]} : vector<30x128xf32> to vector<4x128xf32>
    %73 = vector.extract_strided_slice %72 {offsets = [0, 0], sizes = [1, 128], strides = [1, 1]} : vector<4x128xf32> to vector<1x128xf32>
    %74 = vector.extract_strided_slice %72 {offsets = [2, 0], sizes = [1, 128], strides = [1, 1]} : vector<4x128xf32> to vector<1x128xf32>
    %cst_14 = arith.constant 5.000000e-01 : f32
    %75 = vector.broadcast %cst_14 : f32 to vector<1x128xf32>
    %76 = arith.mulf %74, %75 : vector<1x128xf32>
    %77 = arith.subf %73, %76 : vector<1x128xf32>
    %78 = vector.extract_strided_slice %72 {offsets = [1, 0], sizes = [1, 128], strides = [1, 1]} : vector<4x128xf32> to vector<1x128xf32>
    %79 = vector.extract_strided_slice %72 {offsets = [3, 0], sizes = [1, 128], strides = [1, 1]} : vector<4x128xf32> to vector<1x128xf32>
    %cst_15 = arith.constant 5.000000e-01 : f32
    %80 = vector.broadcast %cst_15 : f32 to vector<1x128xf32>
    %81 = arith.mulf %79, %80 : vector<1x128xf32>
    %82 = arith.subf %78, %81 : vector<1x128xf32>
    %83 = vector.extract_strided_slice %72 {offsets = [0, 0], sizes = [1, 128], strides = [1, 1]} : vector<4x128xf32> to vector<1x128xf32>
    %84 = vector.extract_strided_slice %72 {offsets = [2, 0], sizes = [1, 128], strides = [1, 1]} : vector<4x128xf32> to vector<1x128xf32>
    %cst_16 = arith.constant 5.000000e-01 : f32
    %85 = vector.broadcast %cst_16 : f32 to vector<1x128xf32>
    %86 = arith.mulf %84, %85 : vector<1x128xf32>
    %87 = arith.addf %83, %86 : vector<1x128xf32>
    %88 = vector.extract_strided_slice %72 {offsets = [1, 0], sizes = [1, 128], strides = [1, 1]} : vector<4x128xf32> to vector<1x128xf32>
    %89 = vector.extract_strided_slice %72 {offsets = [3, 0], sizes = [1, 128], strides = [1, 1]} : vector<4x128xf32> to vector<1x128xf32>
    %cst_17 = arith.constant 5.000000e-01 : f32
    %90 = vector.broadcast %cst_17 : f32 to vector<1x128xf32>
    %91 = arith.mulf %89, %90 : vector<1x128xf32>
    %92 = arith.addf %88, %91 : vector<1x128xf32>
    %93 = vector.extract_strided_slice %5 {offsets = [0, 0], sizes = [1, 128], strides = [1, 1]} : vector<4x128xf32> to vector<1x128xf32>
    %94 = vector.extract_strided_slice %5 {offsets = [2, 0], sizes = [1, 128], strides = [1, 1]} : vector<4x128xf32> to vector<1x128xf32>
    %cst_18 = arith.constant 5.000000e-01 : f32
    %95 = vector.broadcast %cst_18 : f32 to vector<1x128xf32>
    %96 = arith.mulf %94, %95 : vector<1x128xf32>
    %97 = arith.subf %93, %96 : vector<1x128xf32>
    %98 = vector.extract_strided_slice %5 {offsets = [1, 0], sizes = [1, 128], strides = [1, 1]} : vector<4x128xf32> to vector<1x128xf32>
    %99 = vector.extract_strided_slice %5 {offsets = [3, 0], sizes = [1, 128], strides = [1, 1]} : vector<4x128xf32> to vector<1x128xf32>
    %cst_19 = arith.constant 5.000000e-01 : f32
    %100 = vector.broadcast %cst_19 : f32 to vector<1x128xf32>
    %101 = arith.mulf %99, %100 : vector<1x128xf32>
    %102 = arith.subf %98, %101 : vector<1x128xf32>
    %103 = vector.extract_strided_slice %5 {offsets = [0, 0], sizes = [1, 128], strides = [1, 1]} : vector<4x128xf32> to vector<1x128xf32>
    %104 = vector.extract_strided_slice %5 {offsets = [2, 0], sizes = [1, 128], strides = [1, 1]} : vector<4x128xf32> to vector<1x128xf32>
    %cst_20 = arith.constant 5.000000e-01 : f32
    %105 = vector.broadcast %cst_20 : f32 to vector<1x128xf32>
    %106 = arith.mulf %104, %105 : vector<1x128xf32>
    %107 = arith.addf %103, %106 : vector<1x128xf32>
    %108 = vector.extract_strided_slice %5 {offsets = [1, 0], sizes = [1, 128], strides = [1, 1]} : vector<4x128xf32> to vector<1x128xf32>
    %109 = vector.extract_strided_slice %5 {offsets = [3, 0], sizes = [1, 128], strides = [1, 1]} : vector<4x128xf32> to vector<1x128xf32>
    %cst_21 = arith.constant 5.000000e-01 : f32
    %110 = vector.broadcast %cst_21 : f32 to vector<1x128xf32>
    %111 = arith.mulf %109, %110 : vector<1x128xf32>
    %112 = arith.addf %108, %111 : vector<1x128xf32>
    %113 = arith.maximumf %77, %97 : vector<1x128xf32>
    %114 = arith.maximumf %82, %102 : vector<1x128xf32>
    %115 = arith.minimumf %87, %107 : vector<1x128xf32>
    %116 = arith.minimumf %92, %112 : vector<1x128xf32>
    %117 = arith.subf %115, %113 : vector<1x128xf32>
    %cst_22 = arith.constant 0.000000e+00 : f32
    %118 = vector.broadcast %cst_22 : f32 to vector<1x128xf32>
    %119 = arith.maximumf %117, %118 : vector<1x128xf32>
    %120 = arith.subf %116, %114 : vector<1x128xf32>
    %cst_23 = arith.constant 0.000000e+00 : f32
    %121 = vector.broadcast %cst_23 : f32 to vector<1x128xf32>
    %122 = arith.maximumf %120, %121 : vector<1x128xf32>
    %123 = arith.mulf %119, %122 : vector<1x128xf32>
    %124 = arith.subf %87, %77 : vector<1x128xf32>
    %125 = arith.subf %92, %82 : vector<1x128xf32>
    %126 = arith.mulf %124, %125 : vector<1x128xf32>
    %127 = math.absf %126 : vector<1x128xf32>
    %128 = arith.subf %107, %97 : vector<1x128xf32>
    %129 = arith.subf %112, %102 : vector<1x128xf32>
    %130 = arith.mulf %128, %129 : vector<1x128xf32>
    %131 = math.absf %130 : vector<1x128xf32>
    %132 = arith.addf %127, %131 : vector<1x128xf32>
    %133 = arith.subf %132, %123 : vector<1x128xf32>
    %cst_24 = arith.constant 9.99999997E-7 : f32
    %134 = vector.broadcast %cst_24 : f32 to vector<1x128xf32>
    %135 = arith.addf %133, %134 : vector<1x128xf32>
    %136 = tpu.reciprocal %135 {approx = true} : vector<1x128xf32> -> vector<1x128xf32>
    %137 = arith.mulf %123, %136 : vector<1x128xf32>
    %138 = arith.cmpf ogt, %137, %71 : vector<1x128xf32>
    %139 = arith.extui %138 : vector<1x128xi1> to vector<1x128xi32>
    %140 = arith.sitofp %139 : vector<1x128xi32> to vector<1x128xf32>
    %141 = vector.extract_strided_slice %4 {offsets = [20, 0], sizes = [1, 128], strides = [1, 1]} : vector<30x128xf32> to vector<1x128xf32>
    %cst_25 = arith.constant 1.000000e+00 : f32
    %142 = vector.broadcast %cst_25 : f32 to vector<1x128xf32>
    %143 = arith.subf %142, %141 : vector<1x128xf32>
    %144 = vector.extract_strided_slice %3 {offsets = [26, 0], sizes = [4, 128], strides = [1, 1]} : vector<30x128xf32> to vector<4x128xf32>
    %145 = vector.broadcast %140 : vector<1x128xf32> to vector<4x128xf32>
    %146 = arith.mulf %145, %144 : vector<4x128xf32>
    %cst_26 = arith.constant 1.000000e+00 : f32
    %147 = vector.broadcast %cst_26 : f32 to vector<1x128xf32>
    %148 = arith.subf %147, %140 : vector<1x128xf32>
    %149 = vector.extract_strided_slice %3 {offsets = [21, 0], sizes = [4, 128], strides = [1, 1]} : vector<30x128xf32> to vector<4x128xf32>
    %150 = vector.broadcast %148 : vector<1x128xf32> to vector<4x128xf32>
    %151 = arith.mulf %150, %149 : vector<4x128xf32>
    %152 = arith.addf %146, %151 : vector<4x128xf32>
    %153 = vector.broadcast %141 : vector<1x128xf32> to vector<4x128xf32>
    %154 = arith.mulf %153, %152 : vector<4x128xf32>
    %155 = vector.extract_strided_slice %4 {offsets = [21, 0], sizes = [4, 128], strides = [1, 1]} : vector<30x128xf32> to vector<4x128xf32>
    %156 = vector.broadcast %141 : vector<1x128xf32> to vector<4x128xf32>
    %157 = arith.mulf %156, %155 : vector<4x128xf32>
    %158 = vector.extract_strided_slice %154 {offsets = [0, 0], sizes = [2, 128], strides = [1, 1]} : vector<4x128xf32> to vector<2x128xf32>
    %159 = vector.extract_strided_slice %157 {offsets = [0, 0], sizes = [2, 128], strides = [1, 1]} : vector<4x128xf32> to vector<2x128xf32>
    %160 = arith.subf %158, %159 : vector<2x128xf32>
    %161 = vector.extract_strided_slice %154 {offsets = [2, 0], sizes = [2, 128], strides = [1, 1]} : vector<4x128xf32> to vector<2x128xf32>
    %162 = math.absf %161 : vector<2x128xf32>
    %cst_27 = arith.constant 9.99999997E-7 : f32
    %163 = vector.broadcast %cst_27 : f32 to vector<2x128xf32>
    %164 = arith.addf %162, %163 : vector<2x128xf32>
    %165 = math.sqrt %164 : vector<2x128xf32>
    %166 = vector.extract_strided_slice %157 {offsets = [2, 0], sizes = [2, 128], strides = [1, 1]} : vector<4x128xf32> to vector<2x128xf32>
    %167 = math.absf %166 : vector<2x128xf32>
    %cst_28 = arith.constant 9.99999997E-7 : f32
    %168 = vector.broadcast %cst_28 : f32 to vector<2x128xf32>
    %169 = arith.addf %167, %168 : vector<2x128xf32>
    %170 = math.sqrt %169 : vector<2x128xf32>
    %171 = arith.subf %165, %170 : vector<2x128xf32>
    %172 = arith.mulf %160, %160 : vector<2x128xf32>
    %173 = arith.mulf %171, %171 : vector<2x128xf32>
    %174 = arith.addf %172, %173 : vector<2x128xf32>
    %cst_29 = arith.constant dense<0.000000e+00> : vector<128xf32>
    %175 = vector.multi_reduction <add>, %174, %cst_29 [0] : vector<2x128xf32> to vector<128xf32>
    %176 = vector.shape_cast %175 : vector<128xf32> to vector<1x128xf32>
    %177 = vector.extract_strided_slice %3 {offsets = [25, 0], sizes = [1, 128], strides = [1, 1]} : vector<30x128xf32> to vector<1x128xf32>
    %178 = arith.mulf %140, %177 : vector<1x128xf32>
    %cst_30 = arith.constant 1.000000e+00 : f32
    %179 = vector.broadcast %cst_30 : f32 to vector<1x128xf32>
    %180 = arith.subf %179, %140 : vector<1x128xf32>
    %181 = vector.extract_strided_slice %3 {offsets = [20, 0], sizes = [1, 128], strides = [1, 1]} : vector<30x128xf32> to vector<1x128xf32>
    %182 = arith.mulf %180, %181 : vector<1x128xf32>
    %183 = arith.addf %178, %182 : vector<1x128xf32>
    %184 = vector.extract_strided_slice %4 {offsets = [20, 0], sizes = [1, 128], strides = [1, 1]} : vector<30x128xf32> to vector<1x128xf32>
    %185 = arith.subf %183, %184 : vector<1x128xf32>
    %186 = arith.mulf %141, %185 : vector<1x128xf32>
    %187 = arith.mulf %186, %186 : vector<1x128xf32>
    %188 = vector.extract_strided_slice %3 {offsets = [20, 0], sizes = [1, 128], strides = [1, 1]} : vector<30x128xf32> to vector<1x128xf32>
    %189 = vector.extract_strided_slice %4 {offsets = [20, 0], sizes = [1, 128], strides = [1, 1]} : vector<30x128xf32> to vector<1x128xf32>
    %190 = arith.subf %188, %189 : vector<1x128xf32>
    %191 = arith.mulf %143, %190 : vector<1x128xf32>
    %192 = vector.extract_strided_slice %3 {offsets = [25, 0], sizes = [1, 128], strides = [1, 1]} : vector<30x128xf32> to vector<1x128xf32>
    %193 = vector.extract_strided_slice %4 {offsets = [20, 0], sizes = [1, 128], strides = [1, 1]} : vector<30x128xf32> to vector<1x128xf32>
    %194 = arith.subf %192, %193 : vector<1x128xf32>
    %195 = arith.mulf %143, %194 : vector<1x128xf32>
    %196 = arith.mulf %191, %191 : vector<1x128xf32>
    %197 = arith.mulf %195, %195 : vector<1x128xf32>
    %198 = arith.addf %196, %197 : vector<1x128xf32>
    %199 = vector.extract_strided_slice %3 {offsets = [0, 0], sizes = [20, 128], strides = [1, 1]} : vector<30x128xf32> to vector<20x128xf32>
    %200 = vector.extract_strided_slice %4 {offsets = [0, 0], sizes = [20, 128], strides = [1, 1]} : vector<30x128xf32> to vector<20x128xf32>
    %201 = arith.subf %199, %200 : vector<20x128xf32>
    %202 = vector.broadcast %141 : vector<1x128xf32> to vector<20x128xf32>
    %203 = arith.mulf %202, %201 : vector<20x128xf32>
    %204 = arith.mulf %203, %203 : vector<20x128xf32>
    %cst_31 = arith.constant dense<0.000000e+00> : vector<128xf32>
    %205 = vector.multi_reduction <add>, %204, %cst_31 [0] : vector<20x128xf32> to vector<128xf32>
    %206 = vector.shape_cast %205 : vector<128xf32> to vector<1x128xf32>
    %c0_32 = arith.constant 0 : index
    %c0_33 = arith.constant 0 : index
    %207 = vector.load %arg5[%c0_32, %c0_33] : memref<1x128xf32, #tpu.memory_space<vmem>>, vector<1x128xf32>
    %cst_34 = arith.constant 5.000000e+00 : f32
    %208 = vector.broadcast %cst_34 : f32 to vector<1x128xf32>
    %209 = arith.mulf %208, %176 : vector<1x128xf32>
    %210 = arith.addf %209, %187 : vector<1x128xf32>
    %cst_35 = arith.constant 5.000000e-01 : f32
    %211 = vector.broadcast %cst_35 : f32 to vector<1x128xf32>
    %212 = arith.mulf %211, %198 : vector<1x128xf32>
    %213 = arith.addf %210, %212 : vector<1x128xf32>
    %214 = arith.addf %213, %206 : vector<1x128xf32>
    %215 = arith.addf %207, %214 : vector<1x128xf32>
    %c0_36 = arith.constant 0 : index
    %c0_37 = arith.constant 0 : index
    %216 = vector.load %arg5[%c0_36, %c0_37] : memref<1x128xf32, #tpu.memory_space<vmem>>, vector<1x128xf32>
    tpu.vector_store %arg5[%c0_36, %c0_37], %215 {strides = array<i32>} : memref<1x128xf32, #tpu.memory_space<vmem>>, vector<1x128xf32>,
    %c0_i32_38 = arith.constant 0 : i32
    %217 = arith.cmpi eq, %arg1, %c0_i32_38 : i32
    %218 = arith.extui %217 : i1 to i32
    %c0_i32_39 = arith.constant 0 : i32
    %219 = arith.cmpi ne, %218, %c0_i32_39 : i32
    scf.if %219 {
      %c0_40 = arith.constant 0 : index
      %c0_41 = arith.constant 0 : index
      %220 = vector.load %arg5[%c0_40, %c0_41] : memref<1x128xf32, #tpu.memory_space<vmem>>, vector<1x128xf32>
      %221 = vector.shape_cast %220 : vector<1x128xf32> to vector<1x1x128xf32>
      %cst_42 = arith.constant dense<0.000000e+00> : vector<1xf32>
      %222 = vector.multi_reduction <add>, %221, %cst_42 [1, 2] : vector<1x1x128xf32> to vector<1xf32>
      %223 = vector.shape_cast %222 : vector<1xf32> to vector<1x1x1xf32>
      %224 = vector.extract %223[0, 0, 0] : f32 from vector<1x1x1xf32>
      %c0_43 = arith.constant 0 : index
      %c0_44 = arith.constant 0 : index
      %c0_45 = arith.constant 0 : index
      %225 = memref.load %arg4[%c0_43, %c0_44, %c0_45] : memref<1x1x1xf32, #tpu.memory_space<smem>>
      memref.store %224, %arg4[%c0_43, %c0_44, %c0_45] : memref<1x1x1xf32, #tpu.memory_space<smem>>
    } else {
    }
    return
  }
  func.func @transform_0(%arg0: i32, %arg1: i32) -> (i32, i32) {
    %c1_i32 = arith.constant 1 : i32
    %0 = arith.muli %arg0, %c1_i32 : i32
    %1 = arith.addi %0, %arg1 : i32
    %c0_i32 = arith.constant 0 : i32
    %c0_i32_0 = arith.constant 0 : i32
    return %c0_i32, %1 : i32, i32
  }
  func.func @transform_1(%arg0: i32, %arg1: i32) -> (i32, i32) {
    %c1_i32 = arith.constant 1 : i32
    %0 = arith.muli %arg0, %c1_i32 : i32
    %1 = arith.addi %0, %arg1 : i32
    %c0_i32 = arith.constant 0 : i32
    %c0_i32_0 = arith.constant 0 : i32
    return %c0_i32, %1 : i32, i32
  }
  func.func @transform_2(%arg0: i32, %arg1: i32) -> (i32, i32, i32) {
    %c0_i32 = arith.constant 0 : i32
    %c0_i32_0 = arith.constant 0 : i32
    %c0_i32_1 = arith.constant 0 : i32
    return %arg0, %c0_i32, %c0_i32_0 : i32, i32, i32
  }
}

</mosaic_0001>

<llo_original>
// kernel: tpu_custom_call.1
$region0: #{tpu_custom_call.1}
  #allocation0 [shape = 'u32[]', space=smem, size = 0x4, offset = 0x4, fixed_abs, tag = 'smem constant byte address 0x4 - core index']
  #allocation1 [shape = 'u32[144,128]{1,0:T(1,128)}', space=vmem, size = 0x12000, scoped, tag = 'internal scratch']
  #allocation2 [shape = 'f32[1,128]{1,0:T(1,128)}', space=vmem, size = 0x200, scoped, tag = 'scratch operand']
  %s0 = inlined_call_operand.hbm [shape: f32[30,256], index: 0, kind: input, shape index: {}]
  %s1 = inlined_call_operand.hbm [shape: f32[30,256], index: 1, kind: input, shape index: {}]
  %s2 = inlined_call_operand.vmem [shape: f32[2,1,1], index: 2, kind: output, shape index: {}]
  %s3 = sld [smem:[#allocation0]]
  $region57: #{tpu_custom_call.1} parent=0
    _
  %s5 = ssub.s32 1, %s3
  %s6 = scalar_select 0, %s5, %s3
  $region1: #{tpu_custom_call.1} parent=0
    #allocation3 [shape = 'u8[32768]{0}', space=vmem, size = 0x8000, scoped, tag = 'input window, operand 0']
    #allocation4 [shape = 's32[2]{0}', space=sflag, size = 0x8, scoped, tag = 'scoped memory for tpu_custom_call.1']
    #allocation5 [shape = 's32[2]{0}', space=sflag, size = 0x8, scoped, tag = 'scoped memory for tpu_custom_call.1']
    #allocation6 [shape = 'u8[32768]{0}', space=vmem, size = 0x8000, scoped, tag = 'input window, operand 1']
    #allocation7 [shape = 's32[2]{0}', space=sflag, size = 0x8, scoped, tag = 'scoped memory for tpu_custom_call.1']
    #allocation8 [shape = 'u8[1024]{0}', space=smem, size = 0x400, scoped, tag = 'output window, operand 0']
    %7 = vsyncpa [#allocation4], 0
    %s8 = scalar_lea.sflag [#allocation4], 1
    %9 = vsyncpa %s8, 0
    %10 = vsyncpa [#allocation7], 0
    %s11 = scalar_lea.sflag [#allocation7], 1
    %12 = vsyncpa %s11, 0
    %13 = vsyncpa [#allocation5], 0
    %s14 = scalar_lea.sflag [#allocation5], 1
    %15 = vsyncpa %s14, 0
    loop: start=0, step=1, limit=4
    $region2: #{tpu_custom_call.1} parent=1 // loop_pre_header
      _
    $region3: #{tpu_custom_call.1} parent=1 // loop_header
      %s17 = sphi 0, %s21
      %p18 = scmp.ge.s32.totalorder %s17, 4
      %s24 = sphi 0, %s36
      %s25 = sphi 0, %s32
      %s26 = sphi 0, %s24
      %s27 = sphi 0, %s25
      %s28 = sphi 0, %s26
      %s29 = sphi 0, %s27
      %s41 = sphi 0, %s43
      %s44 = sphi 0, %s41
      %s45 = sphi 0, %s44
      %s61 = sphi 0, %s45
      %s69 = sphi 0, %s71
      %s72 = sphi 0, %s69
      %s73 = sphi 0, %s72
      %s89 = sphi 0, %s73
      %s95 = sphi 0, %s97
      %s98 = sphi 0, %s95
      %s99 = sphi 0, %s98
      %s115 = sphi 0, %s99
    $region4: #{tpu_custom_call.1} parent=1 // loop_header_branch
      %20 = sbr.rel (%p18) target = $region8
    $region5: #{tpu_custom_call.1} parent=1 // loop_body
      %s22 = ssub.s32 %s17, 1
      %s23 = ssub.s32 %s17, 2
      %s30 = sadd.s32 1, %s25
      %p31 = scmp.ge.s32.totalorder %s30, 1
      %s32 = scalar_select %p31, 0, %s30
      %s33 = sadd.s32 1, %s24
      %s34 = scalar_select %p31, %s33, %s24
      %p35 = scmp.ge.s32.totalorder %s34, 2
      %s36 = scalar_select %p35, 0, %s34
      %s37 = sadd.s32 %s24, %s25
      %s38 = sadd.s32 %s36, %s32
      %s39 = ssub.s32 %s37, %s38
      %p40 = scmp.eq.s32.totalorder %s39, 0
      %s42 = sadd.s32 %s41, 1
      %s43 = scalar_select %p40, %s41, %s42
      %p46 = pneg %p40
      %p47 = scmp.eq.s32.totalorder %s17, 1
      %p48 = por %p46, %p47
      %p49 = scmp.ne.s32.totalorder %s41, %s44
      %p50 = scmp.eq.s32.totalorder %s17, 0
      %p51 = por %p49, %p50
      %p52 = scmp.ne.s32.totalorder %s41, %s44
      %p53 = scmp.eq.s32.totalorder %s22, 1
      %p54 = por %p52, %p53
      %p55 = scmp.ne.s32.totalorder %s44, %s45
      %p56 = scmp.eq.s32.totalorder %s22, 0
      %p57 = por %p55, %p56
      %p58 = scmp.ne.s32.totalorder %s44, %s45
      %p59 = scmp.eq.s32.totalorder %s23, 1
      %p60 = por %p58, %p59
      %p62 = scmp.ne.s32.totalorder %s45, %s61
      %p63 = scmp.eq.s32.totalorder %s23, 0
      %p64 = por %p62, %p63
      %s65 = sadd.s32 %s24, %s25
      %s66 = sadd.s32 %s36, %s32
      %s67 = ssub.s32 %s65, %s66
      %p68 = scmp.eq.s32.totalorder %s67, 0
      %s70 = sadd.s32 %s69, 1
      %s71 = scalar_select %p68, %s69, %s70
      %p74 = pneg %p68
      %p75 = scmp.eq.s32.totalorder %s17, 1
      %p76 = por %p74, %p75
      %p77 = scmp.ne.s32.totalorder %s69, %s72
      %p78 = scmp.eq.s32.totalorder %s17, 0
      %p79 = por %p77, %p78
      %p80 = scmp.ne.s32.totalorder %s69, %s72
      %p81 = scmp.eq.s32.totalorder %s22, 1
      %p82 = por %p80, %p81
      %p83 = scmp.ne.s32.totalorder %s72, %s73
      %p84 = scmp.eq.s32.totalorder %s22, 0
      %p85 = por %p83, %p84
      %p86 = scmp.ne.s32.totalorder %s72, %s73
      %p87 = scmp.eq.s32.totalorder %s23, 1
      %p88 = por %p86, %p87
      %p90 = scmp.ne.s32.totalorder %s73, %s89
      %p91 = scmp.eq.s32.totalorder %s23, 0
      %p92 = por %p90, %p91
      %s93 = ssub.s32 %s24, %s36
      %p94 = scmp.eq.s32.totalorder %s93, 0
      %s96 = sadd.s32 %s95, 1
      %s97 = scalar_select %p94, %s95, %s96
      %p100 = pneg %p94
      %p101 = scmp.eq.s32.totalorder %s17, 1
      %p102 = por %p100, %p101
      %p103 = scmp.ne.s32.totalorder %s95, %s98
      %p104 = scmp.eq.s32.totalorder %s17, 0
      %p105 = por %p103, %p104
      %p106 = scmp.ne.s32.totalorder %s95, %s98
      %p107 = scmp.eq.s32.totalorder %s22, 1
      %p108 = por %p106, %p107
      %p109 = scmp.ne.s32.totalorder %s98, %s99
      %p110 = scmp.eq.s32.totalorder %s22, 0
      %p111 = por %p109, %p110
      %p112 = scmp.ne.s32.totalorder %s98, %s99
      %p113 = scmp.eq.s32.totalorder %s23, 1
      %p114 = por %p112, %p113
      %p116 = scmp.ne.s32.totalorder %s99, %s115
      %p117 = scmp.eq.s32.totalorder %s23, 0
      %p118 = por %p116, %p117
      %p119 = scmp.le.s32.totalorder 1, %s17
      %p120 = scmp.lt.s32.totalorder %s17, 3
      %p121 = pnand %p119, %p120
      %p122 = pneg %p121
      // Predicated region
      $region9: #{tpu_custom_call.1} parent=5 // pred_check
        _
      $region10: #{tpu_custom_call.1} parent=5 // pred_check_branch
        %124 = sbr.rel (%p121) target = $region12
      $region11: #{tpu_custom_call.1} parent=5 // pred_region
        %s125 = ssub.s32 %s17, 1
      $region12: #{tpu_custom_call.1} parent=5 // pred_fallthru
        _
      %p126 = scmp.lt.s32.totalorder %s17, 2
      // Predicated region
      $region13: #{tpu_custom_call.1} parent=5 // pred_check
        %p127 = pneg %p126
      $region14: #{tpu_custom_call.1} parent=5 // pred_check_branch
        %129 = sbr.rel (%p127) target = $region16
      $region15: #{tpu_custom_call.1} parent=5 // pred_region
        // Predicated region
        $region17: #{tpu_custom_call.1} parent=15 // pred_check
          %p130 = pneg %p51
        $region18: #{tpu_custom_call.1} parent=15 // pred_check_branch
          %132 = sbr.rel (%p130) target = $region20
        $region19: #{tpu_custom_call.1} parent=15 // pred_region
          %s133 = sand.u32 %s41, 1
          %s134 = scalar_lea.sflag [#allocation4], %s133
          %s135 = sand.u32 %s41, 1
          %s136 = smul.addr %s135, 32
          %s137 = scalar_lea.vmem [#allocation3], %s136
          %s138 = sadd.s32 %s24, %s25
          %s140 = ssub.s32 512, 512
          %141 = vsyncadd %s134, %s140
          %s142 = smul.addr %s138, 128
          %s143 = scalar_lea.hbm %s0, %s142
          %s144 = sshll.u32 %s137, 4
          %s145 = int_to_ptr.vmem [resolvable:$true] %s144
          %150 = dma.hbm_to_vmem [thread:$0]  %s143, 512, %s145, %s134, 256, 128, 8
        $region20: #{tpu_custom_call.1} parent=15 // pred_fallthru
          _
        // Predicated region
        $region21: #{tpu_custom_call.1} parent=15 // pred_check
          %p151 = pneg %p79
        $region22: #{tpu_custom_call.1} parent=15 // pred_check_branch
          %153 = sbr.rel (%p151) target = $region24
        $region23: #{tpu_custom_call.1} parent=15 // pred_region
          %s154 = sand.u32 %s69, 1
          %s155 = scalar_lea.sflag [#allocation7], %s154
          %s156 = sand.u32 %s69, 1
          %s157 = smul.addr %s156, 32
          %s158 = scalar_lea.vmem [#allocation6], %s157
          %s159 = sadd.s32 %s24, %s25
          %s161 = ssub.s32 512, 512
          %162 = vsyncadd %s155, %s161
          %s163 = smul.addr %s159, 128
          %s164 = scalar_lea.hbm %s1, %s163
          %s165 = sshll.u32 %s158, 4
          %s166 = int_to_ptr.vmem [resolvable:$true] %s165
          %171 = dma.hbm_to_vmem [thread:$0]  %s164, 512, %s166, %s155, 256, 128, 8
        $region24: #{tpu_custom_call.1} parent=15 // pred_fallthru
          _
      $region16: #{tpu_custom_call.1} parent=5 // pred_fallthru
        _
      %p172 = scmp.le.s32.totalorder 1, %s17
      %p173 = scmp.lt.s32.totalorder %s17, 3
      %p174 = pnand %p172, %p173
      %p175 = pneg %p174
      // Predicated region
      $region25: #{tpu_custom_call.1} parent=5 // pred_check
        _
      $region26: #{tpu_custom_call.1} parent=5 // pred_check_branch
        %177 = sbr.rel (%p174) target = $region28
      $region27: #{tpu_custom_call.1} parent=5 // pred_region
        %s178 = ssub.s32 %s17, 1
        %s179 = sand.u32 %s44, 1
        %s180 = scalar_lea.sflag [#allocation4], %s179
        %s181 = sand.u32 %s44, 1
        %s182 = smul.addr %s181, 32
        %s183 = scalar_lea.vmem [#allocation3], %s182
        // Predicated region
        $region29: #{tpu_custom_call.1} parent=27 // pred_check
          %p184 = pneg %p57
        $region30: #{tpu_custom_call.1} parent=27 // pred_check_branch
          %186 = sbr.rel (%p184) target = $region32
        $region31: #{tpu_custom_call.1} parent=27 // pred_region
          %187 = dma.done %s180, 512
        $region32: #{tpu_custom_call.1} parent=27 // pred_fallthru
          _
        %s188 = sand.u32 %s72, 1
        %s189 = scalar_lea.sflag [#allocation7], %s188
        %s190 = sand.u32 %s72, 1
        %s191 = smul.addr %s190, 32
        %s192 = scalar_lea.vmem [#allocation6], %s191
        // Predicated region
        $region33: #{tpu_custom_call.1} parent=27 // pred_check
          %p193 = pneg %p85
        $region34: #{tpu_custom_call.1} parent=27 // pred_check_branch
          %195 = sbr.rel (%p193) target = $region36
        $region35: #{tpu_custom_call.1} parent=27 // pred_region
          %196 = dma.done %s189, 512
        $region36: #{tpu_custom_call.1} parent=27 // pred_fallthru
          _
        %s197 = sand.u32 %s44, 1
        %s198 = scalar_lea.sflag [#allocation4], %s197
        %s199 = sand.u32 %s44, 1
        %s200 = smul.addr %s199, 32
        %s201 = scalar_lea.vmem [#allocation3], %s200
        %p202 = pneg %p57
        %p203 = pneg %p54
        %s204 = sand.u32 %s72, 1
        %s205 = scalar_lea.sflag [#allocation7], %s204
        %s206 = sand.u32 %s72, 1
        %s207 = smul.addr %s206, 32
        %s208 = scalar_lea.vmem [#allocation6], %s207
        %p209 = pneg %p85
        %p210 = pneg %p82
        %p211 = pneg %p111
        %p212 = pneg %p108
        %s213 = sand.u32 %s98, 1
        %s214 = scalar_lea.sflag [#allocation5], %s213
        %s215 = sand.u32 %s98, 1
        %s216 = smul.addr %s215, 128
        %s217 = scalar_lea.smem [#allocation8], %s216
        %s218 = sadd.s32 %s26, %s27
        %s219 = sadd.s32 %s26, %s27
        %p220 = scmp.eq.s32.totalorder %s27, 0
        // Predicated region
        $region37: #{tpu_custom_call.1} parent=27 // pred_check
          %p221 = pneg %p220
        $region38: #{tpu_custom_call.1} parent=27 // pred_check_branch
          %223 = sbr.rel (%p221) target = $region40
        $region39: #{tpu_custom_call.1} parent=27 // pred_region
          %224 = vst [vmem:[#allocation2] sm:$0x1] 0.0
        $region40: #{tpu_custom_call.1} parent=27 // pred_fallthru
          _
        %v225 = vld [vmem:[%s183] sm:$0xff]
        %v226 = vld [vmem:[%s183 + $0x8] sm:$0xff]
        %v227 = vld [vmem:[%s183 + $0x10] sm:$0xff]
        %v228 = vld [vmem:[%s183 + $0x18] sm:$0x3f]
        %v229 = vld [vmem:[%s192] sm:$0xff]
        %v230 = vld [vmem:[%s192 + $0x8] sm:$0xff]
        %v231 = vld [vmem:[%s192 + $0x10] sm:$0xff]
        %v232 = vld [vmem:[%s192 + $0x18] sm:$0x3f]
        %v233 = vmul.f32 %v227, 0.5
        %v235 = vrot.slane %v233, 2
        %v237 = vsub.f32 %v227, %v235
        %v238 = vmul.f32 %v228, 0.5
        %v240 = vrot.slane %v238, 2
        %v242 = vsub.f32 %v227, %v240
        %v243 = vadd.f32 %v227, %v235
        %v244 = vadd.f32 %v227, %v240
        %v245 = vmul.f32 %v231, 0.5
        %v247 = vrot.slane %v245, 2
        %v249 = vsub.f32 %v231, %v247
        %v250 = vmul.f32 %v232, 0.5
        %v252 = vrot.slane %v250, 2
        %v254 = vsub.f32 %v231, %v252
        %v255 = vadd.f32 %v231, %v247
        %v256 = vadd.f32 %v231, %v252
        %v257 = vmax.f32 %v237, %v249
        %v258 = vmax.f32 %v242, %v254
        %v259 = vmin.f32 %v243, %v255
        %v260 = vmin.f32 %v244, %v256
        %v261 = vsub.f32 %v259, %v257
        %v262 = vmax.f32 %v261, 0.0
        %v263 = vsub.f32 %v260, %v258
        %v264 = vmax.f32 %v263, 0.0
        %v266 = vrot.slane %v264, 1
        %v268 = vmul.f32 %v262, %v266
        %v269 = vsub.f32 %v243, %v237
        %v270 = vsub.f32 %v244, %v242
        %v272 = vrot.slane %v270, 1
        %v274 = vmul.f32 %v269, %v272
        %v275 = vand.u32 2147483647, %v274
        %v276 = vsub.f32 %v255, %v249
        %v277 = vsub.f32 %v256, %v254
        %v279 = vrot.slane %v277, 1
        %v281 = vmul.f32 %v276, %v279
        %v282 = vand.u32 2147483647, %v281
        %v283 = vadd.f32 %v275, %v282
        %v284 = vsub.f32 %v283, %v268
        %v285 = vadd.f32 %v284, 1e-06
        %v286 = vrcp.pop %v285
        %v287 = vmul.f32 %v268, %v286
        %v288 = vsub.f32 %v228, %v240
        %v289 = vadd.f32 %v228, %v240
        %v291 = vrot.slane %v249, 3
        %v293 = vmax.f32 %v288, %v291
        %v295 = vrot.slane %v254, 3
        %v297 = vmax.f32 %v288, %v295
        %v299 = vrot.slane %v255, 3
        %v301 = vmin.f32 %v289, %v299
        %v303 = vrot.slane %v256, 3
        %v305 = vmin.f32 %v289, %v303
        %v306 = vsub.f32 %v301, %v293
        %v307 = vmax.f32 %v306, 0.0
        %v308 = vsub.f32 %v305, %v297
        %v309 = vmax.f32 %v308, 0.0
        %v311 = vrot.slane %v309, 1
        %v313 = vmul.f32 %v307, %v311
        %v314 = vsub.f32 %v289, %v288
        %v316 = vrot.slane %v314, 1
        %v318 = vmul.f32 %v314, %v316
        %v319 = vand.u32 2147483647, %v318
        %v321 = vrot.slane %v282, 3
        %v323 = vadd.f32 %v319, %v321
        %v324 = vsub.f32 %v323, %v313
        %v325 = vadd.f32 %v324, 1e-06
        %v326 = vrcp.pop %v325
        %v327 = vmul.f32 %v313, %v326
        %v329 = vrot.slane %v287, 3
        %vm331 = vcmp.gt.f32.partialorder %v327, %v329
        %v332 = vsel %vm331, 1, 0
        %v333 = vcvt.s32.f32 %v332
        %v334 = vsub.f32 1.0, %v231
        %v335 = vlaneseq
        %v336 = vshrl.u32 %v335, 7
        %v337 = vsub.s32 2, %v336
        %v338 = vrot.slane %v333, %v337
        %v339 = vmul.f32 %v338, %v228
        %v340 = vsub.f32 1.0, %v333
        %v341 = vlaneseq
        %v342 = vshrl.u32 %v341, 7
        %v343 = vsub.s32 2, %v342
        %v344 = vrot.slane %v340, %v343
        %v345 = vmul.f32 %v344, %v227
        %v346 = vmul.f32 %v344, %v228
        %vm349 = vcmask 1044480
        %v350 = vrot.slane %v345, 3
        %v351 = vrot.slane %v346, 3
        %v352 = vsel %vm349, %v350, %v351
        %v354 = vadd.f32 %v339, %v352
        %v355 = vlaneseq
        %v356 = vshrl.u32 %v355, 7
        %v357 = vsub.s32 4, %v356
        %v358 = vrot.slane %v231, %v357
        %v359 = vmul.f32 %v358, %v354
        %v360 = vmul.f32 %v358, %v231
        %v361 = vmul.f32 %v358, %v232
        %v363 = vrot.slane %v360, 3
        %v365 = vsub.f32 %v359, %v363
        %v366 = vand.u32 2147483647, %v359
        %v367 = vadd.f32 %v366, 1e-06
        %v368 = vrsqrt.pop %v367
        %v369 = vmul.f32 %v367, %v368
        %vm370 = vcmp.eq.f32.partialorder %v367, inf
        %v371 = vsel %vm370, %v367, %v369
        %vm372 = vcmp.eq.f32.partialorder %v367, 0.0
        %v373 = vand.u32 %v367, 2147483648
        %v374 = vsel %vm372, %v373, %v371
        %v375 = vand.u32 2147483647, %v360
        %v376 = vand.u32 2147483647, %v361
        %v377 = vadd.f32 %v375, 1e-06
        %v378 = vadd.f32 %v376, 1e-06
        %v379 = vrsqrt.pop %v377
        %v380 = vmul.f32 %v377, %v379
        %vm381 = vcmp.eq.f32.partialorder %v377, inf
        %v382 = vsel %vm381, %v377, %v380
        %vm383 = vcmp.eq.f32.partialorder %v377, 0.0
        %v384 = vand.u32 %v377, 2147483648
        %v385 = vsel %vm383, %v384, %v382
        %v386 = vrsqrt.pop %v378
        %v387 = vmul.f32 %v378, %v386
        %vm388 = vcmp.eq.f32.partialorder %v378, inf
        %v389 = vsel %vm388, %v378, %v387
        %vm390 = vcmp.eq.f32.partialorder %v378, 0.0
        %v391 = vand.u32 %v378, 2147483648
        %v392 = vsel %vm390, %v391, %v389
        %v395 = vrot.slane %v385, 3
        %v396 = vrot.slane %v392, 3
        %v397 = vsel %vm349, %v395, %v396
        %v399 = vsub.f32 %v374, %v397
        %v400 = vmul.f32 %v365, %v365
        %v401 = vmul.f32 %v399, %v399
        %v403 = vrot.slane %v401, 2
        %v405 = vadd.f32 %v400, %v403
        %v407 = vrot.slane %v405, 2
        %vm409 = vcmask 1041408
        %v410 = vsel %vm409, %v407, 0.0
        %v411 = vrot.slane %v410, 4
        %v412 = vadd.f32 %v410, %v411
        %v413 = vrot.slane %v412, 2
        %v414 = vadd.f32 %v412, %v413
        %v415 = vrot.slane %v414, 1
        %v416 = vadd.f32 %v414, %v415
        %v418 = vrot.slane %v228, 7
        %v420 = vmul.f32 %v333, %v418
        %v422 = vrot.slane %v227, 2
        %v424 = vmul.f32 %v340, %v422
        %v425 = vadd.f32 %v420, %v424
        %v427 = vrot.slane %v231, 2
        %v429 = vsub.f32 %v425, %v427
        %v431 = vrot.slane %v429, 6
        %v433 = vmul.f32 %v231, %v431
        %v434 = vmul.f32 %v433, %v433
        %v435 = vsub.f32 %v227, %v231
        %v436 = vmul.f32 %v334, %v435
        %v437 = vrot.slane %v231, 3
        %v439 = vsub.f32 %v228, %v437
        %v441 = vrot.slane %v439, 5
        %v443 = vmul.f32 %v334, %v441
        %v444 = vmul.f32 %v436, %v436
        %v445 = vmul.f32 %v443, %v443
        %v446 = vadd.f32 %v444, %v445
        %v447 = vsub.f32 %v225, %v229
        %v448 = vsub.f32 %v226, %v230
        %v449 = vmul.f32 %v358, %v447
        %v450 = vmul.f32 %v358, %v448
        %v451 = vmul.f32 %v358, %v435
        %v452 = vmul.f32 %v449, %v449
        %v453 = vmul.f32 %v450, %v450
        %v454 = vmul.f32 %v451, %v451
        %v455 = vadd.f32 %v452, %v453
        %vm456 = vcmask 1043456
        %v457 = vsel %vm456, %v454, 0.0
        %v458 = vadd.f32 %v455, %v457
        %v459 = vrot.slane %v458, 4
        %v460 = vadd.f32 %v458, %v459
        %v461 = vrot.slane %v460, 2
        %v462 = vadd.f32 %v460, %v461
        %v463 = vrot.slane %v462, 1
        %v464 = vadd.f32 %v462, %v463
        %v465 = vld [vmem:[#allocation2] sm:$0x1]
        %v466 = vmul.f32 %v416, 5.0
        %v467 = vadd.f32 %v466, %v434
        %v468 = vmul.f32 %v446, 0.5
        %v469 = vadd.f32 %v467, %v468
        %v470 = vadd.f32 %v469, %v464
        %v472 = vcombine.high %v470, %v470
        %v474 = vunpack.c.l.s4 1966171168
        %v475 = vunpack.c.0.s8 %v474
        %v476 = vlaneseq
        %v477 = vshrl.u32 %v476, 7
        %v478 = vsub.s32 %v475, %v477
        %v479 = vrot.slane %v472, %v478
        %v481 = vunpack.c.l.s4 1966171168
        %v482 = vunpack.c.0.s8 %v481
        %v483 = vlaneseq
        %v484 = vshrl.u32 %v483, 7
        %v485 = vsub.s32 %v482, %v484
        %v486 = vrot.slane %v479, %v485
        %v488 = vadd.f32 %v465, %v486
        %489 = vst [vmem:[#allocation2] sm:$0x1] %v488
        // Predicated region
        $region41: #{tpu_custom_call.1} parent=27 // pred_check
          %p490 = pneg %p220
        $region42: #{tpu_custom_call.1} parent=27 // pred_check_branch
          %492 = sbr.rel (%p490) target = $region44
        $region43: #{tpu_custom_call.1} parent=27 // pred_region
          %v493 = vld [vmem:[#allocation2] sm:$0x1]
          %vm494 = vcmask 1040384
          %v495 = vsel %vm494, %v493, 0.0
          %496 = vadd.xlane.f32.xlu0 %v495
          %v497 = vpop.xlane.xlu0 %496
          %v498 = vrot.slane %v497, 4
          %v499 = vadd.f32 %v497, %v498
          %v500 = vrot.slane %v499, 2
          %v501 = vadd.f32 %v499, %v500
          %v502 = vrot.slane %v501, 1
          %v503 = vadd.f32 %v501, %v502
          %s504 = vtos %v503
          %s505 = scalar_lea.smem %s217, 0 [#allocation8]
          %506 = sst [smem:[%s505]] %s504
        $region44: #{tpu_custom_call.1} parent=27 // pred_fallthru
          _
        %s507 = sand.u32 %s98, 1
        %s508 = scalar_lea.sflag [#allocation5], %s507
        %s509 = sand.u32 %s98, 1
        %s510 = smul.addr %s509, 128
        %s511 = scalar_lea.smem [#allocation8], %s510
        // Predicated region
        $region45: #{tpu_custom_call.1} parent=27 // pred_check
          %p512 = pneg %p108
        $region46: #{tpu_custom_call.1} parent=27 // pred_check_branch
          %514 = sbr.rel (%p512) target = $region48
        $region47: #{tpu_custom_call.1} parent=27 // pred_region
          %s516 = ssub.s32 16, 16
          %517 = vsyncadd %s508, %s516
          %s518 = scalar_lea.vmem %s2, %s26
          %s520 = sshll.u32 %s518, 4
          %s521 = int_to_ptr.vmem [resolvable:$true] %s520
          %523 = dma.smem_to_vmem %s511, 16, %s521, %s508
        $region48: #{tpu_custom_call.1} parent=27 // pred_fallthru
          _
      $region28: #{tpu_custom_call.1} parent=5 // pred_fallthru
        _
      %p524 = scmp.le.s32.totalorder 2, %s17
      // Predicated region
      $region49: #{tpu_custom_call.1} parent=5 // pred_check
        %p525 = pneg %p524
      $region50: #{tpu_custom_call.1} parent=5 // pred_check_branch
        %527 = sbr.rel (%p525) target = $region52
      $region51: #{tpu_custom_call.1} parent=5 // pred_region
        %s528 = ssub.s32 %s17, 2
        // Predicated region
        $region53: #{tpu_custom_call.1} parent=51 // pred_check
          %p529 = pneg %p114
        $region54: #{tpu_custom_call.1} parent=51 // pred_check_branch
          %531 = sbr.rel (%p529) target = $region56
        $region55: #{tpu_custom_call.1} parent=51 // pred_region
          %s532 = sand.u32 %s99, 1
          %s533 = scalar_lea.sflag [#allocation5], %s532
          %s534 = sand.u32 %s99, 1
          %s535 = smul.addr %s534, 128
          %s536 = scalar_lea.smem [#allocation8], %s535
          %537 = dma.done %s533, 16
        $region56: #{tpu_custom_call.1} parent=51 // pred_fallthru
          _
        %538 = sfence
      $region52: #{tpu_custom_call.1} parent=5 // pred_fallthru
        _
    $region6: #{tpu_custom_call.1} parent=1 // loop_footer
      %s21 = sadd.s32 1, %s17
    $region7: #{tpu_custom_call.1} parent=1 // loop_footer_branch
      %16 = sbr.rel target = $region3
    $region8: #{tpu_custom_call.1} parent=1 // loop_exit
      _
    %539 = vsyncpa [#allocation4], 1
    %s540 = scalar_lea.sflag [#allocation4], 1
    %541 = vsyncpa %s540, 1
    %542 = vsyncpa [#allocation7], 1
    %s543 = scalar_lea.sflag [#allocation7], 1
    %544 = vsyncpa %s543, 1
    %545 = vsyncpa [#allocation5], 1
    %s546 = scalar_lea.sflag [#allocation5], 1
    %547 = vsyncpa %s546, 1

</llo_original>
